<compile_context>
chip_gen: v5e
topology: v5e:2x2
jax: 0.10.0
libtpu: 0.0.40
codegen_flags: <defaults>
</compile_context>

<pallas_src>
from itertools import combinations_with_replacement

import numpy as np
import jax
import jax.numpy as jnp
from jax.experimental import pallas as pl
from jax.experimental.pallas import tpu as pltpu


_LANE = 128
_SUBLANE = 8


def _round_up(x, m):
    return (x + m - 1) // m * m


def _poly_indices(n_in, poly_degree):
    """Same index lists the PyTorch module builds in __init__."""
    return [
        np.array(list(combinations_with_replacement(range(n_in), degree)),
                 dtype=np.int32)
        for degree in range(1, poly_degree + 1)
    ]


def _make_kernel(n_out_pad, deg_blocks, use_pool):
    """deg_blocks: list of (degree d >= 2, padded combo count ncp)."""
    n_deg = len(deg_blocks)

    def kernel(*refs):
        i = 0
        x_ref = refs[i]; i += 1
        if use_pool:
            pool_ref = refs[i]; i += 1
        wsel_ref = refs[i]; i += 1
        wd_refs = refs[i:i + n_deg]; i += n_deg
        b_ref = refs[i]; i += 1
        o_ref = refs[i]

        # Stage 1: average pooling as one small one-hot MXU matmul.
        if use_pool:
            xp = jnp.dot(x_ref[...], pool_ref[...],
                         preferred_element_type=jnp.float32)
        else:
            xp = x_ref[...]

        # Stage 2: degree-1 weights + every slot-selection matrix fused into
        # one wide, lane-aligned MXU matmul.
        y = jnp.dot(xp, wsel_ref[...], preferred_element_type=jnp.float32)

        # Degree-1 contribution (already multiplied by W) + bias.
        acc = y[:, :n_out_pad] + b_ref[...]

        col = n_out_pad
        for (d, ncp), wd_ref in zip(deg_blocks, wd_refs):
            # Elementwise product over the d slots of this degree (VPU).
            z = y[:, col:col + ncp]
            col += ncp
            for _ in range(1, d):
                z = z * y[:, col:col + ncp]
                col += ncp
            # One lane-dense output matmul per degree (K = ncp, N = 128).
            acc = acc + jnp.dot(z, wd_ref[...],
                                preferred_element_type=jnp.float32)

        o_ref[...] = acc

    return kernel


def polynomial_regressor_forward(x, W, b, poly_degree, avg_pool_size=None):
    """Pallas implementation of PolynomialRegressor.forward (NCHW input)."""
    batch = x.shape[0]
    feat_shape = x.shape[1:]
    chw = int(np.prod(feat_shape))

    # ---- host-side constant construction -----------------------------------
    if avg_pool_size is not None:
        C, H, Wd = feat_shape
        k = avg_pool_size
        Hp, Wp = H // k, Wd // k
        n_in = C * Hp * Wp
        c_idx, h_idx, w_idx = np.meshgrid(
            np.arange(C), np.arange(H), np.arange(Wd), indexing="ij")
        pool_map = (c_idx * (Hp * Wp) + (h_idx // k) * Wp + (w_idx // k)
                    ).reshape(-1).astype(np.int64)
        pool_scale = np.float32(1.0 / (k * k))
        use_pool = True
    else:
        n_in = chw
        use_pool = False

    idx_list = _poly_indices(n_in, poly_degree)
    n_predictors = sum(len(i) for i in idx_list)
    n_out = W.shape[1]
    assert W.shape == (n_predictors, n_out)
    assert b.shape == (n_out,)
    n_out_pad = _round_up(n_out, _LANE)
    n_in_pad = _round_up(n_in, _LANE)

    W_np = np.asarray(W, dtype=np.float32)
    b_np = np.asarray(b, dtype=np.float32)

    # One-hot pooling matrix (only if pooling is enabled).
    if use_pool:
        pool_mat = np.zeros((chw, n_in_pad), dtype=np.float32)
        pool_mat[np.arange(chw), pool_map] = pool_scale

    # Degree-1 block: just the (padded) first n_in rows of W.
    blocks = []
    w1 = np.zeros((n_in_pad, n_out_pad), dtype=np.float32)
    w1[:n_in, :n_out] = W_np[:n_in]
    blocks.append(w1)

    # Degrees >= 2: one one-hot selection matrix per slot; each slot block is
    # padded to a multiple of 128 so in-kernel slices are lane-aligned.
    deg_blocks = []      # (degree, padded combo count) for the kernel
    wd_mats = []         # per-degree output weights, padded (ncp, n_out_pad)
    row = n_in
    for d, idx in zip(range(2, poly_degree + 1), idx_list[1:]):
        nc = idx.shape[0]
        ncp = _round_up(nc, _LANE)
        deg_blocks.append((d, ncp))
        for slot in range(d):
            sel = np.zeros((n_in_pad, ncp), dtype=np.float32)
            sel[idx[:, slot], np.arange(nc)] = 1.0
            blocks.append(sel)
        wd = np.zeros((ncp, n_out_pad), dtype=np.float32)
        wd[:nc, :n_out] = W_np[row:row + nc]
        wd_mats.append(wd)
        row += nc

    w_sel = np.concatenate(blocks, axis=1)                    # (n_in_pad, total)
    total_cols = int(w_sel.shape[1])
    b_pad = np.zeros((1, n_out_pad), dtype=np.float32)
    b_pad[0, :n_out] = b_np

    # ---- batch tiling / grid ----------------------------------------------
    x_flat = jnp.asarray(x, dtype=jnp.float32).reshape(batch, chw)
    if not use_pool and chw < n_in_pad:
        # No pooling stage: pad features to n_in_pad lanes on the host so the
        # kernel sees a lane-aligned xp directly.
        x_flat = jnp.pad(x_flat, ((0, 0), (0, n_in_pad - chw)))
    x_cols = chw if use_pool else n_in_pad

    tb = min(256, _round_up(batch, _SUBLANE))
    pad_b = (-batch) % tb
    if pad_b:
        x_flat = jnp.pad(x_flat, ((0, pad_b), (0, 0)))
    batch_p = batch + pad_b
    grid = (batch_p // tb,)

    inputs = [x_flat]
    in_specs = [pl.BlockSpec((tb, x_cols), lambda i: (i, 0))]
    if use_pool:
        inputs.append(jnp.asarray(pool_mat))
        in_specs.append(pl.BlockSpec((chw, n_in_pad), lambda i: (0, 0)))
    inputs.append(jnp.asarray(w_sel))
    in_specs.append(pl.BlockSpec((n_in_pad, total_cols), lambda i: (0, 0)))
    for m in wd_mats:
        inputs.append(jnp.asarray(m))
        in_specs.append(pl.BlockSpec(tuple(m.shape), lambda i: (0, 0)))
    inputs.append(jnp.asarray(b_pad))
    in_specs.append(pl.BlockSpec((1, n_out_pad), lambda i: (0, 0)))

    out_specs = pl.BlockSpec((tb, n_out_pad), lambda i: (i, 0))

    flops = 0
    if use_pool:
        flops += 2 * batch_p * chw * n_in_pad
    flops += 2 * batch_p * n_in_pad * total_cols
    flops += sum(2 * batch_p * ncp * n_out_pad for _, ncp in deg_blocks)
    bytes_accessed = int(sum(int(np.prod(a.shape)) * 4 for a in inputs)
                         + batch_p * n_out_pad * 4)

    out = pl.pallas_call(
        _make_kernel(n_out_pad, deg_blocks, use_pool),
        out_shape=jax.ShapeDtypeStruct((batch_p, n_out_pad), jnp.float32),
        grid=grid,
        in_specs=in_specs,
        out_specs=out_specs,
        compiler_params=pltpu.CompilerParams(
            dimension_semantics=("parallel",)),
        cost_estimate=pl.CostEstimate(
            flops=int(flops), transcendentals=0,
            bytes_accessed=bytes_accessed),
    )(*inputs)

    return out[:batch, :n_out]


def reference_forward(x, W, b, poly_degree, avg_pool_size=None):
    """Pure-JAX replica of the PyTorch forward (for verification)."""
    if avg_pool_size is not None:
        k = avg_pool_size
        B, C, H, Wd = x.shape
        x = x.reshape(B, C, H // k, k, Wd // k, k).mean(axis=(3, 5))
    xf = x.reshape(x.shape[0], -1)
    idx_list = _poly_indices(xf.shape[1], poly_degree)
    z = [jnp.prod(xf[:, jnp.asarray(idx)], axis=2) for idx in idx_list]
    total_x = jnp.concatenate(z, axis=1)
    return total_x @ W + b


if __name__ == "__main__":
    # Module config: n_in = 4*2*2 = 16 features after AvgPool2d(8) on (4,16,16)
    batch, C, H, Wd = 2, 4, 16, 16
    avg_pool_size = 8
    poly_degree = 2
    n_out = 8

    n_in = C * (H // avg_pool_size) * (Wd // avg_pool_size)
    n_predictors = sum(len(i) for i in _poly_indices(n_in, poly_degree))

    key = jax.random.PRNGKey(0)
    kx, kw = jax.random.split(key)
    x = jax.random.normal(kx, (batch, C, H, Wd), dtype=jnp.float32)
    # deterministic parameter init mirroring the module: randn/sqrt(n_pred), zeros
    W = jax.random.normal(kw, (n_predictors, n_out), dtype=jnp.float32) \
        / (n_predictors ** 0.5)
    b = jnp.zeros((n_out,), dtype=jnp.float32)

    out = polynomial_regressor_forward(x, W, b, poly_degree, avg_pool_size)
    out = jax.block_until_ready(out)

    ref = reference_forward(x, W, b, poly_degree, avg_pool_size)
    assert out.shape == (batch, n_out)
    np.testing.assert_allclose(np.asarray(out), np.asarray(ref),
                               rtol=1e-3, atol=1e-3)
    print("KERNEL_OK")
</pallas_src>

<mosaic_0001>
module attributes {stable_mosaic.version = 11 : i64} {
  func.func @kernel(%arg0: i32, %arg1: memref<8x1024xf32, #tpu.memory_space<vmem>>, %arg2: memref<1024x128xf32, #tpu.memory_space<vmem>>, %arg3: memref<128x640xf32, #tpu.memory_space<vmem>>, %arg4: memref<256x128xf32, #tpu.memory_space<vmem>>, %arg5: memref<1x128xf32, #tpu.memory_space<vmem>>, %arg6: memref<8x128xf32, #tpu.memory_space<vmem>>) attributes {dimension_semantics = [#tpu.dimension_semantics<parallel>], iteration_bounds = array<i64: 1>, scalar_prefetch = 0 : i64, scratch_operands = 0 : i64, tpu.core_type = #tpu.core_type<tc>, window_params = [{transform_indices = @transform_0, window_bounds = array<i64: 8, 1024>}, {pipeline_mode = #tpu.pipeline_mode<synchronous>, transform_indices = @transform_1, window_bounds = array<i64: 1024, 128>}, {pipeline_mode = #tpu.pipeline_mode<synchronous>, transform_indices = @transform_2, window_bounds = array<i64: 128, 640>}, {pipeline_mode = #tpu.pipeline_mode<synchronous>, transform_indices = @transform_3, window_bounds = array<i64: 256, 128>}, {pipeline_mode = #tpu.pipeline_mode<synchronous>, transform_indices = @transform_4, window_bounds = array<i64: 1, 128>}, {transform_indices = @transform_5, window_bounds = array<i64: 8, 128>}]} {
    %c0 = arith.constant 0 : index
    %c0_0 = arith.constant 0 : index
    %0 = vector.load %arg1[%c0, %c0_0] : memref<8x1024xf32, #tpu.memory_space<vmem>>, vector<8x1024xf32>
    %c0_1 = arith.constant 0 : index
    %c0_2 = arith.constant 0 : index
    %1 = vector.load %arg2[%c0_1, %c0_2] : memref<1024x128xf32, #tpu.memory_space<vmem>>, vector<1024x128xf32>
    %cst = arith.constant dense<0.000000e+00> : vector<8x128xf32>
    %2 = tpu.matmul %0, %1, %cst {dimension_numbers = #tpu.dot_dimension_numbers<[1], [0], [0], [1], [0, 0, 1, 1], [], []>} : vector<8x1024xf32>, vector<1024x128xf32>, vector<8x128xf32> -> vector<8x128xf32>
    %c0_3 = arith.constant 0 : index
    %c0_4 = arith.constant 0 : index
    %3 = vector.load %arg3[%c0_3, %c0_4] : memref<128x640xf32, #tpu.memory_space<vmem>>, vector<128x640xf32>
    %cst_5 = arith.constant dense<0.000000e+00> : vector<8x640xf32>
    %4 = tpu.matmul %2, %3, %cst_5 {dimension_numbers = #tpu.dot_dimension_numbers<[1], [0], [0], [1], [0, 0, 1, 1], [], []>} : vector<8x128xf32>, vector<128x640xf32>, vector<8x640xf32> -> vector<8x640xf32>
    %5 = vector.extract_strided_slice %4 {offsets = [0, 0], sizes = [8, 128], strides = [1, 1]} : vector<8x640xf32> to vector<8x128xf32>
    %c0_6 = arith.constant 0 : index
    %c0_7 = arith.constant 0 : index
    %6 = vector.load %arg5[%c0_6, %c0_7] : memref<1x128xf32, #tpu.memory_space<vmem>>, vector<1x128xf32>
    %7 = vector.broadcast %6 : vector<1x128xf32> to vector<8x128xf32>
    %8 = arith.addf %5, %7 : vector<8x128xf32>
    %9 = vector.extract_strided_slice %4 {offsets = [0, 128], sizes = [8, 256], strides = [1, 1]} : vector<8x640xf32> to vector<8x256xf32>
    %10 = vector.extract_strided_slice %4 {offsets = [0, 384], sizes = [8, 256], strides = [1, 1]} : vector<8x640xf32> to vector<8x256xf32>
    %11 = arith.mulf %9, %10 : vector<8x256xf32>
    %c0_8 = arith.constant 0 : index
    %c0_9 = arith.constant 0 : index
    %12 = vector.load %arg4[%c0_8, %c0_9] : memref<256x128xf32, #tpu.memory_space<vmem>>, vector<256x128xf32>
    %cst_10 = arith.constant dense<0.000000e+00> : vector<8x128xf32>
    %13 = tpu.matmul %11, %12, %cst_10 {dimension_numbers = #tpu.dot_dimension_numbers<[1], [0], [0], [1], [0, 0, 1, 1], [], []>} : vector<8x256xf32>, vector<256x128xf32>, vector<8x128xf32> -> vector<8x128xf32>
    %14 = arith.addf %8, %13 : vector<8x128xf32>
    %c0_11 = arith.constant 0 : index
    %c0_12 = arith.constant 0 : index
    %15 = vector.load %arg6[%c0_11, %c0_12] : memref<8x128xf32, #tpu.memory_space<vmem>>, vector<8x128xf32>
    tpu.vector_store %arg6[%c0_11, %c0_12], %14 {strides = array<i32>} : memref<8x128xf32, #tpu.memory_space<vmem>>, vector<8x128xf32>,
    return
  }
  func.func @transform_0(%arg0: i32) -> (i32, i32) {
    %c0_i32 = arith.constant 0 : i32
    %c0_i32_0 = arith.constant 0 : i32
    return %arg0, %c0_i32 : i32, i32
  }
  func.func @transform_1(%arg0: i32) -> (i32, i32) {
    %c0_i32 = arith.constant 0 : i32
    %c0_i32_0 = arith.constant 0 : i32
    %c0_i32_1 = arith.constant 0 : i32
    return %c0_i32, %c0_i32_0 : i32, i32
  }
  func.func @transform_2(%arg0: i32) -> (i32, i32) {
    %c0_i32 = arith.constant 0 : i32
    %c0_i32_0 = arith.constant 0 : i32
    %c0_i32_1 = arith.constant 0 : i32
    return %c0_i32, %c0_i32_0 : i32, i32
  }
  func.func @transform_3(%arg0: i32) -> (i32, i32) {
    %c0_i32 = arith.constant 0 : i32
    %c0_i32_0 = arith.constant 0 : i32
    %c0_i32_1 = arith.constant 0 : i32
    return %c0_i32, %c0_i32_0 : i32, i32
  }
  func.func @transform_4(%arg0: i32) -> (i32, i32) {
    %c0_i32 = arith.constant 0 : i32
    %c0_i32_0 = arith.constant 0 : i32
    %c0_i32_1 = arith.constant 0 : i32
    return %c0_i32, %c0_i32_0 : i32, i32
  }
  func.func @transform_5(%arg0: i32) -> (i32, i32) {
    %c0_i32 = arith.constant 0 : i32
    %c0_i32_0 = arith.constant 0 : i32
    return %arg0, %c0_i32 : i32, i32
  }
}

</mosaic_0001>

<llo_original>
// kernel: tpu_custom_call.1
$region0: #{tpu_custom_call.1}
  #allocation0 [shape = 'u32[]', space=smem, size = 0x4, offset = 0x4, fixed_abs, tag = 'smem constant byte address 0x4 - core index']
  #allocation1 [shape = 'u32[72,128]{1,0:T(1,128)}', space=vmem, size = 0x9000, scoped, tag = 'internal scratch']
  %s0 = inlined_call_operand.hbm [shape: f32[8,1024], index: 0, kind: input, shape index: {}]
  %s1 = inlined_call_operand.hbm [shape: f32[1024,128], index: 1, kind: input, shape index: {}]
  %s2 = inlined_call_operand.hbm [shape: f32[128,640], index: 2, kind: input, shape index: {}]
  %s3 = inlined_call_operand.hbm [shape: f32[256,128], index: 3, kind: input, shape index: {}]
  %s4 = inlined_call_operand.vmem [shape: f32[1,128], index: 4, kind: input, shape index: {}]
  %s5 = inlined_call_operand.hbm [shape: f32[8,128], index: 5, kind: output, shape index: {}]
  %s6 = sld [smem:[#allocation0]]
  $region46: #{tpu_custom_call.1} parent=0
    _
  %s8 = ssub.s32 1, %s6
  %s9 = scalar_select 0, %s8, %s6
  $region1: #{tpu_custom_call.1} parent=0
    #allocation2 [shape = 'u8[32768]{0}', space=vmem, size = 0x8000, scoped, tag = 'input window, operand 0, single buffered']
    #allocation3 [shape = 's32[1]{0}', space=sflag, size = 0x4, scoped, tag = 'scoped memory for tpu_custom_call.1']
    #allocation4 [shape = 's32[1]{0}', space=sflag, size = 0x4, scoped, tag = 'scoped memory for tpu_custom_call.1']
    #allocation5 [shape = 'u8[524288]{0}', space=vmem, size = 0x80000, scoped, tag = 'input window, operand 1, single buffered']
    #allocation6 [shape = 's32[1]{0}', space=sflag, size = 0x4, scoped, tag = 'scoped memory for tpu_custom_call.1']
    #allocation7 [shape = 'u8[327680]{0}', space=vmem, size = 0x50000, scoped, tag = 'input window, operand 2, single buffered']
    #allocation8 [shape = 'u8[131072]{0}', space=vmem, size = 0x20000, scoped, tag = 'input window, operand 3, single buffered']
    #allocation9 [shape = 's32[1]{0}', space=sflag, size = 0x4, scoped, tag = 'scoped memory for tpu_custom_call.1']
    #allocation10 [shape = 'u8[4096]{0}', space=vmem, size = 0x1000, scoped, tag = 'output window, operand 0, single buffered']
    %10 = vsyncpa [#allocation3], 0
    %11 = vsyncpa [#allocation6], 0
    %12 = vsyncpa [#allocation9], 0
    %13 = vsyncpa [#allocation4], 0
    // Predicated region
    $region2: #{tpu_custom_call.1} parent=1 // pred_check
      _
    $region3: #{tpu_custom_call.1} parent=1 // pred_check_branch
      %15 = sbr.rel (0) target = $region5
    $region4: #{tpu_custom_call.1} parent=1 // pred_region
      %17 = vsyncadd [#allocation3], 0
      %s19 = sshll.u32 %s0, 4
      %s20 = int_to_ptr.hbm [resolvable:$true] %s19
      %s21 = sshll.u32 [#allocation2], 4
      %s22 = int_to_ptr.vmem [resolvable:$true] %s21
      %24 = dma.hbm_to_vmem [thread:$0]  %s20, 1024, %s22, [#allocation3]
    $region5: #{tpu_custom_call.1} parent=1 // pred_fallthru
      _
    // Predicated region
    $region6: #{tpu_custom_call.1} parent=1 // pred_check
      _
    $region7: #{tpu_custom_call.1} parent=1 // pred_check_branch
      %26 = sbr.rel (0) target = $region9
    $region8: #{tpu_custom_call.1} parent=1 // pred_region
      %28 = vsyncadd [#allocation6], 0
      %s29 = sshll.u32 %s1, 4
      %s30 = int_to_ptr.hbm [resolvable:$true] %s29
      %s31 = sshll.u32 [#allocation5], 4
      %s32 = int_to_ptr.vmem [resolvable:$true] %s31
      %37 = dma.hbm_to_vmem [thread:$0]  %s30, 16384, %s32, [#allocation6], 128, 128, 8
    $region9: #{tpu_custom_call.1} parent=1 // pred_fallthru
      _
    // Predicated region
    $region10: #{tpu_custom_call.1} parent=1 // pred_check
      _
    $region11: #{tpu_custom_call.1} parent=1 // pred_check_branch
      %39 = sbr.rel (0) target = $region13
    $region12: #{tpu_custom_call.1} parent=1 // pred_region
      %41 = vsyncadd [#allocation6], 0
      %s42 = sshll.u32 %s2, 4
      %s43 = int_to_ptr.hbm [resolvable:$true] %s42
      %s44 = sshll.u32 [#allocation7], 4
      %s45 = int_to_ptr.vmem [resolvable:$true] %s44
      %50 = dma.hbm_to_vmem [thread:$0]  %s43, 10240, %s45, [#allocation6], 640, 640, 40
    $region13: #{tpu_custom_call.1} parent=1 // pred_fallthru
      _
    // Predicated region
    $region14: #{tpu_custom_call.1} parent=1 // pred_check
      _
    $region15: #{tpu_custom_call.1} parent=1 // pred_check_branch
      %52 = sbr.rel (0) target = $region17
    $region16: #{tpu_custom_call.1} parent=1 // pred_region
      %54 = vsyncadd [#allocation9], 0
      %s55 = sshll.u32 %s3, 4
      %s56 = int_to_ptr.hbm [resolvable:$true] %s55
      %s57 = sshll.u32 [#allocation8], 4
      %s58 = int_to_ptr.vmem [resolvable:$true] %s57
      %63 = dma.hbm_to_vmem [thread:$0]  %s56, 4096, %s58, [#allocation9], 128, 128, 8
    $region17: #{tpu_custom_call.1} parent=1 // pred_fallthru
      _
    // Predicated region
    $region18: #{tpu_custom_call.1} parent=1 // pred_check
      _
    $region19: #{tpu_custom_call.1} parent=1 // pred_check_branch
      %65 = sbr.rel (0) target = $region21
    $region20: #{tpu_custom_call.1} parent=1 // pred_region
      _
    $region21: #{tpu_custom_call.1} parent=1 // pred_fallthru
      _
    // Predicated region
    $region22: #{tpu_custom_call.1} parent=1 // pred_check
      _
    $region23: #{tpu_custom_call.1} parent=1 // pred_check_branch
      %67 = sbr.rel (0) target = $region25
    $region24: #{tpu_custom_call.1} parent=1 // pred_region
      %69 = dma.done [#allocation3], 1024
    $region25: #{tpu_custom_call.1} parent=1 // pred_fallthru
      _
    // Predicated region
    $region26: #{tpu_custom_call.1} parent=1 // pred_check
      _
    $region27: #{tpu_custom_call.1} parent=1 // pred_check_branch
      %71 = sbr.rel (0) target = $region29
    $region28: #{tpu_custom_call.1} parent=1 // pred_region
      %73 = dma.done [#allocation6], 16384
    $region29: #{tpu_custom_call.1} parent=1 // pred_fallthru
      _
    // Predicated region
    $region30: #{tpu_custom_call.1} parent=1 // pred_check
      _
    $region31: #{tpu_custom_call.1} parent=1 // pred_check_branch
      %75 = sbr.rel (0) target = $region33
    $region32: #{tpu_custom_call.1} parent=1 // pred_region
      %77 = dma.done [#allocation6], 10240
    $region33: #{tpu_custom_call.1} parent=1 // pred_fallthru
      _
    // Predicated region
    $region34: #{tpu_custom_call.1} parent=1 // pred_check
      _
    $region35: #{tpu_custom_call.1} parent=1 // pred_check_branch
      %79 = sbr.rel (0) target = $region37
    $region36: #{tpu_custom_call.1} parent=1 // pred_region
      %81 = dma.done [#allocation9], 4096
    $region37: #{tpu_custom_call.1} parent=1 // pred_fallthru
      _
    %v82 = vld [vmem:[#allocation2] sm:$0xff]
    %v83 = vld [vmem:[#allocation2 + $0x8] sm:$0xff]
    %v84 = vld [vmem:[#allocation2 + $0x10] sm:$0xff]
    %v85 = vld [vmem:[#allocation2 + $0x18] sm:$0xff]
    %v86 = vld [vmem:[#allocation2 + $0x20] sm:$0xff]
    %v87 = vld [vmem:[#allocation2 + $0x28] sm:$0xff]
    %v88 = vld [vmem:[#allocation2 + $0x30] sm:$0xff]
    %v89 = vld [vmem:[#allocation2 + $0x38] sm:$0xff]
    %v90 = vld [vmem:[#allocation5] sm:$0xff]
    %v91 = vld [vmem:[#allocation5 + $0x8] sm:$0xff]
    %v92 = vld [vmem:[#allocation5 + $0x10] sm:$0xff]
    %v93 = vld [vmem:[#allocation5 + $0x18] sm:$0xff]
    %v94 = vld [vmem:[#allocation5 + $0x20] sm:$0xff]
    %v95 = vld [vmem:[#allocation5 + $0x28] sm:$0xff]
    %v96 = vld [vmem:[#allocation5 + $0x30] sm:$0xff]
    %v97 = vld [vmem:[#allocation5 + $0x38] sm:$0xff]
    %v98 = vld [vmem:[#allocation5 + $0x40] sm:$0xff]
    %v99 = vld [vmem:[#allocation5 + $0x48] sm:$0xff]
    %v100 = vld [vmem:[#allocation5 + $0x50] sm:$0xff]
    %v101 = vld [vmem:[#allocation5 + $0x58] sm:$0xff]
    %v102 = vld [vmem:[#allocation5 + $0x60] sm:$0xff]
    %v103 = vld [vmem:[#allocation5 + $0x68] sm:$0xff]
    %v104 = vld [vmem:[#allocation5 + $0x70] sm:$0xff]
    %v105 = vld [vmem:[#allocation5 + $0x78] sm:$0xff]
    %v106 = vld [vmem:[#allocation5 + $0x80] sm:$0xff]
    %v107 = vld [vmem:[#allocation5 + $0x88] sm:$0xff]
    %v108 = vld [vmem:[#allocation5 + $0x90] sm:$0xff]
    %v109 = vld [vmem:[#allocation5 + $0x98] sm:$0xff]
    %v110 = vld [vmem:[#allocation5 + $0xa0] sm:$0xff]
    %v111 = vld [vmem:[#allocation5 + $0xa8] sm:$0xff]
    %v112 = vld [vmem:[#allocation5 + $0xb0] sm:$0xff]
    %v113 = vld [vmem:[#allocation5 + $0xb8] sm:$0xff]
    %v114 = vld [vmem:[#allocation5 + $0xc0] sm:$0xff]
    %v115 = vld [vmem:[#allocation5 + $0xc8] sm:$0xff]
    %v116 = vld [vmem:[#allocation5 + $0xd0] sm:$0xff]
    %v117 = vld [vmem:[#allocation5 + $0xd8] sm:$0xff]
    %v118 = vld [vmem:[#allocation5 + $0xe0] sm:$0xff]
    %v119 = vld [vmem:[#allocation5 + $0xe8] sm:$0xff]
    %v120 = vld [vmem:[#allocation5 + $0xf0] sm:$0xff]
    %v121 = vld [vmem:[#allocation5 + $0xf8] sm:$0xff]
    %v122 = vld [vmem:[#allocation5 + $0x100] sm:$0xff]
    %v123 = vld [vmem:[#allocation5 + $0x108] sm:$0xff]
    %v124 = vld [vmem:[#allocation5 + $0x110] sm:$0xff]
    %v125 = vld [vmem:[#allocation5 + $0x118] sm:$0xff]
    %v126 = vld [vmem:[#allocation5 + $0x120] sm:$0xff]
    %v127 = vld [vmem:[#allocation5 + $0x128] sm:$0xff]
    %v128 = vld [vmem:[#allocation5 + $0x130] sm:$0xff]
    %v129 = vld [vmem:[#allocation5 + $0x138] sm:$0xff]
    %v130 = vld [vmem:[#allocation5 + $0x140] sm:$0xff]
    %v131 = vld [vmem:[#allocation5 + $0x148] sm:$0xff]
    %v132 = vld [vmem:[#allocation5 + $0x150] sm:$0xff]
    %v133 = vld [vmem:[#allocation5 + $0x158] sm:$0xff]
    %v134 = vld [vmem:[#allocation5 + $0x160] sm:$0xff]
    %v135 = vld [vmem:[#allocation5 + $0x168] sm:$0xff]
    %v136 = vld [vmem:[#allocation5 + $0x170] sm:$0xff]
    %v137 = vld [vmem:[#allocation5 + $0x178] sm:$0xff]
    %v138 = vld [vmem:[#allocation5 + $0x180] sm:$0xff]
    %v139 = vld [vmem:[#allocation5 + $0x188] sm:$0xff]
    %v140 = vld [vmem:[#allocation5 + $0x190] sm:$0xff]
    %v141 = vld [vmem:[#allocation5 + $0x198] sm:$0xff]
    %v142 = vld [vmem:[#allocation5 + $0x1a0] sm:$0xff]
    %v143 = vld [vmem:[#allocation5 + $0x1a8] sm:$0xff]
    %v144 = vld [vmem:[#allocation5 + $0x1b0] sm:$0xff]
    %v145 = vld [vmem:[#allocation5 + $0x1b8] sm:$0xff]
    %v146 = vld [vmem:[#allocation5 + $0x1c0] sm:$0xff]
    %v147 = vld [vmem:[#allocation5 + $0x1c8] sm:$0xff]
    %v148 = vld [vmem:[#allocation5 + $0x1d0] sm:$0xff]
    %v149 = vld [vmem:[#allocation5 + $0x1d8] sm:$0xff]
    %v150 = vld [vmem:[#allocation5 + $0x1e0] sm:$0xff]
    %v151 = vld [vmem:[#allocation5 + $0x1e8] sm:$0xff]
    %v152 = vld [vmem:[#allocation5 + $0x1f0] sm:$0xff]
    %v153 = vld [vmem:[#allocation5 + $0x1f8] sm:$0xff]
    %v154 = vld [vmem:[#allocation5 + $0x200] sm:$0xff]
    %v155 = vld [vmem:[#allocation5 + $0x208] sm:$0xff]
    %v156 = vld [vmem:[#allocation5 + $0x210] sm:$0xff]
    %v157 = vld [vmem:[#allocation5 + $0x218] sm:$0xff]
    %v158 = vld [vmem:[#allocation5 + $0x220] sm:$0xff]
    %v159 = vld [vmem:[#allocation5 + $0x228] sm:$0xff]
    %v160 = vld [vmem:[#allocation5 + $0x230] sm:$0xff]
    %v161 = vld [vmem:[#allocation5 + $0x238] sm:$0xff]
    %v162 = vld [vmem:[#allocation5 + $0x240] sm:$0xff]
    %v163 = vld [vmem:[#allocation5 + $0x248] sm:$0xff]
    %v164 = vld [vmem:[#allocation5 + $0x250] sm:$0xff]
    %v165 = vld [vmem:[#allocation5 + $0x258] sm:$0xff]
    %v166 = vld [vmem:[#allocation5 + $0x260] sm:$0xff]
    %v167 = vld [vmem:[#allocation5 + $0x268] sm:$0xff]
    %v168 = vld [vmem:[#allocation5 + $0x270] sm:$0xff]
    %v169 = vld [vmem:[#allocation5 + $0x278] sm:$0xff]
    %v170 = vld [vmem:[#allocation5 + $0x280] sm:$0xff]
    %v171 = vld [vmem:[#allocation5 + $0x288] sm:$0xff]
    %v172 = vld [vmem:[#allocation5 + $0x290] sm:$0xff]
    %v173 = vld [vmem:[#allocation5 + $0x298] sm:$0xff]
    %v174 = vld [vmem:[#allocation5 + $0x2a0] sm:$0xff]
    %v175 = vld [vmem:[#allocation5 + $0x2a8] sm:$0xff]
    %v176 = vld [vmem:[#allocation5 + $0x2b0] sm:$0xff]
    %v177 = vld [vmem:[#allocation5 + $0x2b8] sm:$0xff]
    %v178 = vld [vmem:[#allocation5 + $0x2c0] sm:$0xff]
    %v179 = vld [vmem:[#allocation5 + $0x2c8] sm:$0xff]
    %v180 = vld [vmem:[#allocation5 + $0x2d0] sm:$0xff]
    %v181 = vld [vmem:[#allocation5 + $0x2d8] sm:$0xff]
    %v182 = vld [vmem:[#allocation5 + $0x2e0] sm:$0xff]
    %v183 = vld [vmem:[#allocation5 + $0x2e8] sm:$0xff]
    %v184 = vld [vmem:[#allocation5 + $0x2f0] sm:$0xff]
    %v185 = vld [vmem:[#allocation5 + $0x2f8] sm:$0xff]
    %v186 = vld [vmem:[#allocation5 + $0x300] sm:$0xff]
    %v187 = vld [vmem:[#allocation5 + $0x308] sm:$0xff]
    %v188 = vld [vmem:[#allocation5 + $0x310] sm:$0xff]
    %v189 = vld [vmem:[#allocation5 + $0x318] sm:$0xff]
    %v190 = vld [vmem:[#allocation5 + $0x320] sm:$0xff]
    %v191 = vld [vmem:[#allocation5 + $0x328] sm:$0xff]
    %v192 = vld [vmem:[#allocation5 + $0x330] sm:$0xff]
    %v193 = vld [vmem:[#allocation5 + $0x338] sm:$0xff]
    %v194 = vld [vmem:[#allocation5 + $0x340] sm:$0xff]
    %v195 = vld [vmem:[#allocation5 + $0x348] sm:$0xff]
    %v196 = vld [vmem:[#allocation5 + $0x350] sm:$0xff]
    %v197 = vld [vmem:[#allocation5 + $0x358] sm:$0xff]
    %v198 = vld [vmem:[#allocation5 + $0x360] sm:$0xff]
    %v199 = vld [vmem:[#allocation5 + $0x368] sm:$0xff]
    %v200 = vld [vmem:[#allocation5 + $0x370] sm:$0xff]
    %v201 = vld [vmem:[#allocation5 + $0x378] sm:$0xff]
    %v202 = vld [vmem:[#allocation5 + $0x380] sm:$0xff]
    %v203 = vld [vmem:[#allocation5 + $0x388] sm:$0xff]
    %v204 = vld [vmem:[#allocation5 + $0x390] sm:$0xff]
    %v205 = vld [vmem:[#allocation5 + $0x398] sm:$0xff]
    %v206 = vld [vmem:[#allocation5 + $0x3a0] sm:$0xff]
    %v207 = vld [vmem:[#allocation5 + $0x3a8] sm:$0xff]
    %v208 = vld [vmem:[#allocation5 + $0x3b0] sm:$0xff]
    %v209 = vld [vmem:[#allocation5 + $0x3b8] sm:$0xff]
    %v210 = vld [vmem:[#allocation5 + $0x3c0] sm:$0xff]
    %v211 = vld [vmem:[#allocation5 + $0x3c8] sm:$0xff]
    %v212 = vld [vmem:[#allocation5 + $0x3d0] sm:$0xff]
    %v213 = vld [vmem:[#allocation5 + $0x3d8] sm:$0xff]
    %v214 = vld [vmem:[#allocation5 + $0x3e0] sm:$0xff]
    %v215 = vld [vmem:[#allocation5 + $0x3e8] sm:$0xff]
    %v216 = vld [vmem:[#allocation5 + $0x3f0] sm:$0xff]
    %v217 = vld [vmem:[#allocation5 + $0x3f8] sm:$0xff]
    %218 = vmatpush.msra.mxu0 %v105
    %219 = vmatpush.msra.mxu0 %v104
    %220 = vmatpush.msra.mxu0 %v103
    %221 = vmatpush.msra.mxu0 %v102
    %222 = vmatpush.msra.mxu0 %v101
    %223 = vmatpush.msra.mxu0 %v100
    %224 = vmatpush.msra.mxu0 %v99
    %225 = vmatpush.msra.mxu0 %v98
    %226 = vmatpush.msra.mxu0 %v97
    %227 = vmatpush.msra.mxu0 %v96
    %228 = vmatpush.msra.mxu0 %v95
    %229 = vmatpush.msra.mxu0 %v94
    %230 = vmatpush.msra.mxu0 %v93
    %231 = vmatpush.msra.mxu0 %v92
    %232 = vmatpush.msra.mxu0 %v91
    %233 = vmatpush.msra.mxu0 %v90
    %234 = vmatmul.f32.gmra.mxu0 %v82
    %v235 = vpop.f32.mrf.mxu0
    %v236 = vadd.f32 0.0, %v235
    %237 = vdwg.mxu0
    %238 = vmatpush.msra.mxu0 %v121
    %239 = vmatpush.msra.mxu0 %v120
    %240 = vmatpush.msra.mxu0 %v119
    %241 = vmatpush.msra.mxu0 %v118
    %242 = vmatpush.msra.mxu0 %v117
    %243 = vmatpush.msra.mxu0 %v116
    %244 = vmatpush.msra.mxu0 %v115
    %245 = vmatpush.msra.mxu0 %v114
    %246 = vmatpush.msra.mxu0 %v113
    %247 = vmatpush.msra.mxu0 %v112
    %248 = vmatpush.msra.mxu0 %v111
    %249 = vmatpush.msra.mxu0 %v110
    %250 = vmatpush.msra.mxu0 %v109
    %251 = vmatpush.msra.mxu0 %v108
    %252 = vmatpush.msra.mxu0 %v107
    %253 = vmatpush.msra.mxu0 %v106
    %254 = vmatmul.f32.gmra.mxu0 %v83
    %v255 = vpop.f32.mrf.mxu0
    %v256 = vadd.f32 %v236, %v255
    %257 = vdwg.mxu0
    %258 = vmatpush.msra.mxu0 %v137
    %259 = vmatpush.msra.mxu0 %v136
    %260 = vmatpush.msra.mxu0 %v135
    %261 = vmatpush.msra.mxu0 %v134
    %262 = vmatpush.msra.mxu0 %v133
    %263 = vmatpush.msra.mxu0 %v132
    %264 = vmatpush.msra.mxu0 %v131
    %265 = vmatpush.msra.mxu0 %v130
    %266 = vmatpush.msra.mxu0 %v129
    %267 = vmatpush.msra.mxu0 %v128
    %268 = vmatpush.msra.mxu0 %v127
    %269 = vmatpush.msra.mxu0 %v126
    %270 = vmatpush.msra.mxu0 %v125
    %271 = vmatpush.msra.mxu0 %v124
    %272 = vmatpush.msra.mxu0 %v123
    %273 = vmatpush.msra.mxu0 %v122
    %274 = vmatmul.f32.gmra.mxu0 %v84
    %v275 = vpop.f32.mrf.mxu0
    %v276 = vadd.f32 %v256, %v275
    %277 = vdwg.mxu0
    %278 = vmatpush.msra.mxu0 %v153
    %279 = vmatpush.msra.mxu0 %v152
    %280 = vmatpush.msra.mxu0 %v151
    %281 = vmatpush.msra.mxu0 %v150
    %282 = vmatpush.msra.mxu0 %v149
    %283 = vmatpush.msra.mxu0 %v148
    %284 = vmatpush.msra.mxu0 %v147
    %285 = vmatpush.msra.mxu0 %v146
    %286 = vmatpush.msra.mxu0 %v145
    %287 = vmatpush.msra.mxu0 %v144
    %288 = vmatpush.msra.mxu0 %v143
    %289 = vmatpush.msra.mxu0 %v142
    %290 = vmatpush.msra.mxu0 %v141
    %291 = vmatpush.msra.mxu0 %v140
    %292 = vmatpush.msra.mxu0 %v139
    %293 = vmatpush.msra.mxu0 %v138
    %294 = vmatmul.f32.gmra.mxu0 %v85
    %v295 = vpop.f32.mrf.mxu0
    %v296 = vadd.f32 %v276, %v295
    %297 = vdwg.mxu0
    %298 = vmatpush.msra.mxu0 %v169
    %299 = vmatpush.msra.mxu0 %v168
    %300 = vmatpush.msra.mxu0 %v167
    %301 = vmatpush.msra.mxu0 %v166
    %302 = vmatpush.msra.mxu0 %v165
    %303 = vmatpush.msra.mxu0 %v164
    %304 = vmatpush.msra.mxu0 %v163
    %305 = vmatpush.msra.mxu0 %v162
    %306 = vmatpush.msra.mxu0 %v161
    %307 = vmatpush.msra.mxu0 %v160
    %308 = vmatpush.msra.mxu0 %v159
    %309 = vmatpush.msra.mxu0 %v158
    %310 = vmatpush.msra.mxu0 %v157
    %311 = vmatpush.msra.mxu0 %v156
    %312 = vmatpush.msra.mxu0 %v155
    %313 = vmatpush.msra.mxu0 %v154
    %314 = vmatmul.f32.gmra.mxu0 %v86
    %v315 = vpop.f32.mrf.mxu0
    %v316 = vadd.f32 %v296, %v315
    %317 = vdwg.mxu0
    %318 = vmatpush.msra.mxu0 %v185
    %319 = vmatpush.msra.mxu0 %v184
    %320 = vmatpush.msra.mxu0 %v183
    %321 = vmatpush.msra.mxu0 %v182
    %322 = vmatpush.msra.mxu0 %v181
    %323 = vmatpush.msra.mxu0 %v180
    %324 = vmatpush.msra.mxu0 %v179
    %325 = vmatpush.msra.mxu0 %v178
    %326 = vmatpush.msra.mxu0 %v177
    %327 = vmatpush.msra.mxu0 %v176
    %328 = vmatpush.msra.mxu0 %v175
    %329 = vmatpush.msra.mxu0 %v174
    %330 = vmatpush.msra.mxu0 %v173
    %331 = vmatpush.msra.mxu0 %v172
    %332 = vmatpush.msra.mxu0 %v171
    %333 = vmatpush.msra.mxu0 %v170
    %334 = vmatmul.f32.gmra.mxu0 %v87
    %v335 = vpop.f32.mrf.mxu0
    %v336 = vadd.f32 %v316, %v335
    %337 = vdwg.mxu0
    %338 = vmatpush.msra.mxu0 %v201
    %339 = vmatpush.msra.mxu0 %v200
    %340 = vmatpush.msra.mxu0 %v199
    %341 = vmatpush.msra.mxu0 %v198
    %342 = vmatpush.msra.mxu0 %v197
    %343 = vmatpush.msra.mxu0 %v196
    %344 = vmatpush.msra.mxu0 %v195
    %345 = vmatpush.msra.mxu0 %v194
    %346 = vmatpush.msra.mxu0 %v193
    %347 = vmatpush.msra.mxu0 %v192
    %348 = vmatpush.msra.mxu0 %v191
    %349 = vmatpush.msra.mxu0 %v190
    %350 = vmatpush.msra.mxu0 %v189
    %351 = vmatpush.msra.mxu0 %v188
    %352 = vmatpush.msra.mxu0 %v187
    %353 = vmatpush.msra.mxu0 %v186
    %354 = vmatmul.f32.gmra.mxu0 %v88
    %v355 = vpop.f32.mrf.mxu0
    %v356 = vadd.f32 %v336, %v355
    %357 = vdwg.mxu0
    %358 = vmatpush.msra.mxu0 %v217
    %359 = vmatpush.msra.mxu0 %v216
    %360 = vmatpush.msra.mxu0 %v215
    %361 = vmatpush.msra.mxu0 %v214
    %362 = vmatpush.msra.mxu0 %v213
    %363 = vmatpush.msra.mxu0 %v212
    %364 = vmatpush.msra.mxu0 %v211
    %365 = vmatpush.msra.mxu0 %v210
    %366 = vmatpush.msra.mxu0 %v209
    %367 = vmatpush.msra.mxu0 %v208
    %368 = vmatpush.msra.mxu0 %v207
    %369 = vmatpush.msra.mxu0 %v206
    %370 = vmatpush.msra.mxu0 %v205
    %371 = vmatpush.msra.mxu0 %v204
    %372 = vmatpush.msra.mxu0 %v203
    %373 = vmatpush.msra.mxu0 %v202
    %374 = vmatmul.f32.gmra.mxu0 %v89
    %v375 = vpop.f32.mrf.mxu0
    %v376 = vadd.f32 %v356, %v375
    %377 = vdwg.mxu0
    %v378 = vld [vmem:[#allocation7] sm:$0xff]
    %v379 = vld [vmem:[#allocation7 + $0x8] sm:$0xff]
    %v380 = vld [vmem:[#allocation7 + $0x10] sm:$0xff]
    %v381 = vld [vmem:[#allocation7 + $0x18] sm:$0xff]
    %v382 = vld [vmem:[#allocation7 + $0x20] sm:$0xff]
    %v383 = vld [vmem:[#allocation7 + $0x28] sm:$0xff]
    %v384 = vld [vmem:[#allocation7 + $0x30] sm:$0xff]
    %v385 = vld [vmem:[#allocation7 + $0x38] sm:$0xff]
    %v386 = vld [vmem:[#allocation7 + $0x40] sm:$0xff]
    %v387 = vld [vmem:[#allocation7 + $0x48] sm:$0xff]
    %v388 = vld [vmem:[#allocation7 + $0x50] sm:$0xff]
    %v389 = vld [vmem:[#allocation7 + $0x58] sm:$0xff]
    %v390 = vld [vmem:[#allocation7 + $0x60] sm:$0xff]
    %v391 = vld [vmem:[#allocation7 + $0x68] sm:$0xff]
    %v392 = vld [vmem:[#allocation7 + $0x70] sm:$0xff]
    %v393 = vld [vmem:[#allocation7 + $0x78] sm:$0xff]
    %v394 = vld [vmem:[#allocation7 + $0x80] sm:$0xff]
    %v395 = vld [vmem:[#allocation7 + $0x88] sm:$0xff]
    %v396 = vld [vmem:[#allocation7 + $0x90] sm:$0xff]
    %v397 = vld [vmem:[#allocation7 + $0x98] sm:$0xff]
    %v398 = vld [vmem:[#allocation7 + $0xa0] sm:$0xff]
    %v399 = vld [vmem:[#allocation7 + $0xa8] sm:$0xff]
    %v400 = vld [vmem:[#allocation7 + $0xb0] sm:$0xff]
    %v401 = vld [vmem:[#allocation7 + $0xb8] sm:$0xff]
    %v402 = vld [vmem:[#allocation7 + $0xc0] sm:$0xff]
    %v403 = vld [vmem:[#allocation7 + $0xc8] sm:$0xff]
    %v404 = vld [vmem:[#allocation7 + $0xd0] sm:$0xff]
    %v405 = vld [vmem:[#allocation7 + $0xd8] sm:$0xff]
    %v406 = vld [vmem:[#allocation7 + $0xe0] sm:$0xff]
    %v407 = vld [vmem:[#allocation7 + $0xe8] sm:$0xff]
    %v408 = vld [vmem:[#allocation7 + $0xf0] sm:$0xff]
    %v409 = vld [vmem:[#allocation7 + $0xf8] sm:$0xff]
    %v410 = vld [vmem:[#allocation7 + $0x100] sm:$0xff]
    %v411 = vld [vmem:[#allocation7 + $0x108] sm:$0xff]
    %v412 = vld [vmem:[#allocation7 + $0x110] sm:$0xff]
    %v413 = vld [vmem:[#allocation7 + $0x118] sm:$0xff]
    %v414 = vld [vmem:[#allocation7 + $0x120] sm:$0xff]
    %v415 = vld [vmem:[#allocation7 + $0x128] sm:$0xff]
    %v416 = vld [vmem:[#allocation7 + $0x130] sm:$0xff]
    %v417 = vld [vmem:[#allocation7 + $0x138] sm:$0xff]
    %v418 = vld [vmem:[#allocation7 + $0x140] sm:$0xff]
    %v419 = vld [vmem:[#allocation7 + $0x148] sm:$0xff]
    %v420 = vld [vmem:[#allocation7 + $0x150] sm:$0xff]
    %v421 = vld [vmem:[#allocation7 + $0x158] sm:$0xff]
    %v422 = vld [vmem:[#allocation7 + $0x160] sm:$0xff]
    %v423 = vld [vmem:[#allocation7 + $0x168] sm:$0xff]
    %v424 = vld [vmem:[#allocation7 + $0x170] sm:$0xff]
    %v425 = vld [vmem:[#allocation7 + $0x178] sm:$0xff]
    %v426 = vld [vmem:[#allocation7 + $0x180] sm:$0xff]
    %v427 = vld [vmem:[#allocation7 + $0x188] sm:$0xff]
    %v428 = vld [vmem:[#allocation7 + $0x190] sm:$0xff]
    %v429 = vld [vmem:[#allocation7 + $0x198] sm:$0xff]
    %v430 = vld [vmem:[#allocation7 + $0x1a0] sm:$0xff]
    %v431 = vld [vmem:[#allocation7 + $0x1a8] sm:$0xff]
    %v432 = vld [vmem:[#allocation7 + $0x1b0] sm:$0xff]
    %v433 = vld [vmem:[#allocation7 + $0x1b8] sm:$0xff]
    %v434 = vld [vmem:[#allocation7 + $0x1c0] sm:$0xff]
    %v435 = vld [vmem:[#allocation7 + $0x1c8] sm:$0xff]
    %v436 = vld [vmem:[#allocation7 + $0x1d0] sm:$0xff]
    %v437 = vld [vmem:[#allocation7 + $0x1d8] sm:$0xff]
    %v438 = vld [vmem:[#allocation7 + $0x1e0] sm:$0xff]
    %v439 = vld [vmem:[#allocation7 + $0x1e8] sm:$0xff]
    %v440 = vld [vmem:[#allocation7 + $0x1f0] sm:$0xff]
    %v441 = vld [vmem:[#allocation7 + $0x1f8] sm:$0xff]
    %v442 = vld [vmem:[#allocation7 + $0x200] sm:$0xff]
    %v443 = vld [vmem:[#allocation7 + $0x208] sm:$0xff]
    %v444 = vld [vmem:[#allocation7 + $0x210] sm:$0xff]
    %v445 = vld [vmem:[#allocation7 + $0x218] sm:$0xff]
    %v446 = vld [vmem:[#allocation7 + $0x220] sm:$0xff]
    %v447 = vld [vmem:[#allocation7 + $0x228] sm:$0xff]
    %v448 = vld [vmem:[#allocation7 + $0x230] sm:$0xff]
    %v449 = vld [vmem:[#allocation7 + $0x238] sm:$0xff]
    %v450 = vld [vmem:[#allocation7 + $0x240] sm:$0xff]
    %v451 = vld [vmem:[#allocation7 + $0x248] sm:$0xff]
    %v452 = vld [vmem:[#allocation7 + $0x250] sm:$0xff]
    %v453 = vld [vmem:[#allocation7 + $0x258] sm:$0xff]
    %v454 = vld [vmem:[#allocation7 + $0x260] sm:$0xff]
    %v455 = vld [vmem:[#allocation7 + $0x268] sm:$0xff]
    %v456 = vld [vmem:[#allocation7 + $0x270] sm:$0xff]
    %v457 = vld [vmem:[#allocation7 + $0x278] sm:$0xff]
    %458 = vmatpush.msra.mxu0 %v453
    %459 = vmatpush.msra.mxu0 %v448
    %460 = vmatpush.msra.mxu0 %v443
    %461 = vmatpush.msra.mxu0 %v438
    %462 = vmatpush.msra.mxu0 %v433
    %463 = vmatpush.msra.mxu0 %v428
    %464 = vmatpush.msra.mxu0 %v423
    %465 = vmatpush.msra.mxu0 %v418
    %466 = vmatpush.msra.mxu0 %v413
    %467 = vmatpush.msra.mxu0 %v408
    %468 = vmatpush.msra.mxu0 %v403
    %469 = vmatpush.msra.mxu0 %v398
    %470 = vmatpush.msra.mxu0 %v393
    %471 = vmatpush.msra.mxu0 %v388
    %472 = vmatpush.msra.mxu0 %v383
    %473 = vmatpush.msra.mxu0 %v378
    %474 = vmatmul.f32.gmra.mxu0 %v376
    %v475 = vpop.f32.mrf.mxu0
    %v476 = vadd.f32 0.0, %v475
    %477 = vdwg.mxu0
    %478 = vmatpush.msra.mxu0 %v454
    %479 = vmatpush.msra.mxu0 %v449
    %480 = vmatpush.msra.mxu0 %v444
    %481 = vmatpush.msra.mxu0 %v439
    %482 = vmatpush.msra.mxu0 %v434
    %483 = vmatpush.msra.mxu0 %v429
    %484 = vmatpush.msra.mxu0 %v424
    %485 = vmatpush.msra.mxu0 %v419
    %486 = vmatpush.msra.mxu0 %v414
    %487 = vmatpush.msra.mxu0 %v409
    %488 = vmatpush.msra.mxu0 %v404
    %489 = vmatpush.msra.mxu0 %v399
    %490 = vmatpush.msra.mxu0 %v394
    %491 = vmatpush.msra.mxu0 %v389
    %492 = vmatpush.msra.mxu0 %v384
    %493 = vmatpush.msra.mxu0 %v379
    %494 = vmatmul.f32.gmra.mxu0 %v376
    %v495 = vpop.f32.mrf.mxu0
    %v496 = vadd.f32 0.0, %v495
    %497 = vdwg.mxu0
    %498 = vmatpush.msra.mxu0 %v455
    %499 = vmatpush.msra.mxu0 %v450
    %500 = vmatpush.msra.mxu0 %v445
    %501 = vmatpush.msra.mxu0 %v440
    %502 = vmatpush.msra.mxu0 %v435
    %503 = vmatpush.msra.mxu0 %v430
    %504 = vmatpush.msra.mxu0 %v425
    %505 = vmatpush.msra.mxu0 %v420
    %506 = vmatpush.msra.mxu0 %v415
    %507 = vmatpush.msra.mxu0 %v410
    %508 = vmatpush.msra.mxu0 %v405
    %509 = vmatpush.msra.mxu0 %v400
    %510 = vmatpush.msra.mxu0 %v395
    %511 = vmatpush.msra.mxu0 %v390
    %512 = vmatpush.msra.mxu0 %v385
    %513 = vmatpush.msra.mxu0 %v380
    %514 = vmatmul.f32.gmra.mxu0 %v376
    %v515 = vpop.f32.mrf.mxu0
    %v516 = vadd.f32 0.0, %v515
    %517 = vdwg.mxu0
    %518 = vmatpush.msra.mxu0 %v456
    %519 = vmatpush.msra.mxu0 %v451
    %520 = vmatpush.msra.mxu0 %v446
    %521 = vmatpush.msra.mxu0 %v441
    %522 = vmatpush.msra.mxu0 %v436
    %523 = vmatpush.msra.mxu0 %v431
    %524 = vmatpush.msra.mxu0 %v426
    %525 = vmatpush.msra.mxu0 %v421
    %526 = vmatpush.msra.mxu0 %v416
    %527 = vmatpush.msra.mxu0 %v411
    %528 = vmatpush.msra.mxu0 %v406
    %529 = vmatpush.msra.mxu0 %v401
    %530 = vmatpush.msra.mxu0 %v396
    %531 = vmatpush.msra.mxu0 %v391
    %532 = vmatpush.msra.mxu0 %v386
    %533 = vmatpush.msra.mxu0 %v381
    %534 = vmatmul.f32.gmra.mxu0 %v376
    %v535 = vpop.f32.mrf.mxu0
    %v536 = vadd.f32 0.0, %v535
    %537 = vdwg.mxu0
    %538 = vmatpush.msra.mxu0 %v457
    %539 = vmatpush.msra.mxu0 %v452
    %540 = vmatpush.msra.mxu0 %v447
    %541 = vmatpush.msra.mxu0 %v442
    %542 = vmatpush.msra.mxu0 %v437
    %543 = vmatpush.msra.mxu0 %v432
    %544 = vmatpush.msra.mxu0 %v427
    %545 = vmatpush.msra.mxu0 %v422
    %546 = vmatpush.msra.mxu0 %v417
    %547 = vmatpush.msra.mxu0 %v412
    %548 = vmatpush.msra.mxu0 %v407
    %549 = vmatpush.msra.mxu0 %v402
    %550 = vmatpush.msra.mxu0 %v397
    %551 = vmatpush.msra.mxu0 %v392
    %552 = vmatpush.msra.mxu0 %v387
    %553 = vmatpush.msra.mxu0 %v382
    %554 = vmatmul.f32.gmra.mxu0 %v376
    %v555 = vpop.f32.mrf.mxu0
    %v556 = vadd.f32 0.0, %v555
    %557 = vdwg.mxu0
    %v558 = vld [vmem:[%s4] sm:$0x1]
    %v560 = vperm.slane %v558, 0
    %v562 = vadd.f32 %v476, %v560
    %v563 = vmul.f32 %v496, %v536
    %v564 = vmul.f32 %v516, %v556
    %v565 = vld [vmem:[#allocation8] sm:$0xff]
    %v566 = vld [vmem:[#allocation8 + $0x8] sm:$0xff]
    %v567 = vld [vmem:[#allocation8 + $0x10] sm:$0xff]
    %v568 = vld [vmem:[#allocation8 + $0x18] sm:$0xff]
    %v569 = vld [vmem:[#allocation8 + $0x20] sm:$0xff]
    %v570 = vld [vmem:[#allocation8 + $0x28] sm:$0xff]
    %v571 = vld [vmem:[#allocation8 + $0x30] sm:$0xff]
    %v572 = vld [vmem:[#allocation8 + $0x38] sm:$0xff]
    %v573 = vld [vmem:[#allocation8 + $0x40] sm:$0xff]
    %v574 = vld [vmem:[#allocation8 + $0x48] sm:$0xff]
    %v575 = vld [vmem:[#allocation8 + $0x50] sm:$0xff]
    %v576 = vld [vmem:[#allocation8 + $0x58] sm:$0xff]
    %v577 = vld [vmem:[#allocation8 + $0x60] sm:$0xff]
    %v578 = vld [vmem:[#allocation8 + $0x68] sm:$0xff]
    %v579 = vld [vmem:[#allocation8 + $0x70] sm:$0xff]
    %v580 = vld [vmem:[#allocation8 + $0x78] sm:$0xff]
    %v581 = vld [vmem:[#allocation8 + $0x80] sm:$0xff]
    %v582 = vld [vmem:[#allocation8 + $0x88] sm:$0xff]
    %v583 = vld [vmem:[#allocation8 + $0x90] sm:$0xff]
    %v584 = vld [vmem:[#allocation8 + $0x98] sm:$0xff]
    %v585 = vld [vmem:[#allocation8 + $0xa0] sm:$0xff]
    %v586 = vld [vmem:[#allocation8 + $0xa8] sm:$0xff]
    %v587 = vld [vmem:[#allocation8 + $0xb0] sm:$0xff]
    %v588 = vld [vmem:[#allocation8 + $0xb8] sm:$0xff]
    %v589 = vld [vmem:[#allocation8 + $0xc0] sm:$0xff]
    %v590 = vld [vmem:[#allocation8 + $0xc8] sm:$0xff]
    %v591 = vld [vmem:[#allocation8 + $0xd0] sm:$0xff]
    %v592 = vld [vmem:[#allocation8 + $0xd8] sm:$0xff]
    %v593 = vld [vmem:[#allocation8 + $0xe0] sm:$0xff]
    %v594 = vld [vmem:[#allocation8 + $0xe8] sm:$0xff]
    %v595 = vld [vmem:[#allocation8 + $0xf0] sm:$0xff]
    %v596 = vld [vmem:[#allocation8 + $0xf8] sm:$0xff]
    %597 = vmatpush.msra.mxu0 %v580
    %598 = vmatpush.msra.mxu0 %v579
    %599 = vmatpush.msra.mxu0 %v578
    %600 = vmatpush.msra.mxu0 %v577
    %601 = vmatpush.msra.mxu0 %v576
    %602 = vmatpush.msra.mxu0 %v575
    %603 = vmatpush.msra.mxu0 %v574
    %604 = vmatpush.msra.mxu0 %v573
    %605 = vmatpush.msra.mxu0 %v572
    %606 = vmatpush.msra.mxu0 %v571
    %607 = vmatpush.msra.mxu0 %v570
    %608 = vmatpush.msra.mxu0 %v569
    %609 = vmatpush.msra.mxu0 %v568
    %610 = vmatpush.msra.mxu0 %v567
    %611 = vmatpush.msra.mxu0 %v566
    %612 = vmatpush.msra.mxu0 %v565
    %613 = vmatmul.f32.gmra.mxu0 %v563
    %v614 = vpop.f32.mrf.mxu0
    %v615 = vadd.f32 0.0, %v614
    %616 = vdwg.mxu0
    %617 = vmatpush.msra.mxu0 %v596
    %618 = vmatpush.msra.mxu0 %v595
    %619 = vmatpush.msra.mxu0 %v594
    %620 = vmatpush.msra.mxu0 %v593
    %621 = vmatpush.msra.mxu0 %v592
    %622 = vmatpush.msra.mxu0 %v591
    %623 = vmatpush.msra.mxu0 %v590
    %624 = vmatpush.msra.mxu0 %v589
    %625 = vmatpush.msra.mxu0 %v588
    %626 = vmatpush.msra.mxu0 %v587
    %627 = vmatpush.msra.mxu0 %v586
    %628 = vmatpush.msra.mxu0 %v585
    %629 = vmatpush.msra.mxu0 %v584
    %630 = vmatpush.msra.mxu0 %v583
    %631 = vmatpush.msra.mxu0 %v582
    %632 = vmatpush.msra.mxu0 %v581
    %633 = vmatmul.f32.gmra.mxu0 %v564
    %v634 = vpop.f32.mrf.mxu0
    %v635 = vadd.f32 %v615, %v634
    %636 = vdwg.mxu0
    %v637 = vadd.f32 %v562, %v635
    %638 = vst [vmem:[#allocation10] sm:$0xff] %v637
    // Predicated region
    $region38: #{tpu_custom_call.1} parent=1 // pred_check
      _
    $region39: #{tpu_custom_call.1} parent=1 // pred_check_branch
      %640 = sbr.rel (0) target = $region41
    $region40: #{tpu_custom_call.1} parent=1 // pred_region
      %642 = vsyncadd [#allocation4], 0
      %s644 = sshll.u32 [#allocation10], 4
      %s645 = int_to_ptr.vmem [resolvable:$true] %s644
      %s646 = sshll.u32 %s5, 4
      %s647 = int_to_ptr.hbm [resolvable:$true] %s646
      %649 = dma.vmem_to_hbm [thread:$0]  %s645, 128, %s647, [#allocation4]
    $region41: #{tpu_custom_call.1} parent=1 // pred_fallthru
      _
    // Predicated region
    $region42: #{tpu_custom_call.1} parent=1 // pred_check
      _
    $region43: #{tpu_custom_call.1} parent=1 // pred_check_branch
      %651 = sbr.rel (0) target = $region45
    $region44: #{tpu_custom_call.1} parent=1 // pred_region
      %653 = dma.done [#allocation4], 128
    $region45: #{tpu_custom_call.1} parent=1 // pred_fallthru
      _
    %654 = vsyncpa [#allocation3], 1
    %655 = vsyncpa [#allocation6], 1
    %656 = vsyncpa [#allocation9], 1
    %657 = vsyncpa [#allocation4], 1

</llo_original>
